<compile_context>
chip_gen: v7x
topology: tpu7x:2x2x1
jax: 0.10.0
libtpu: 0.0.40
codegen_flags: <defaults>
</compile_context>

<pallas_src>
import jax
import jax.numpy as jnp
from jax.experimental import pallas as pl
from jax.experimental.pallas import tpu as pltpu


# ----------------------------------------------------------------------------
# Tiling constants / helpers
# ----------------------------------------------------------------------------
# Tile sizes are multiples of 256 (M/N) / 128 (lanes) for MXU + lane alignment; sized so that
# double-buffered tiles stay inside v7x's 64 MiB/TC VMEM at realistic hidden sizes.
_TM = 256      # token-axis tile
_TF = 512      # FF-axis chunk (in-kernel reduction axis of the MLP)
_TV = 512      # vocab-axis tile of the lm head (lane-dense output)
_VMEM_LIMIT = 56 * 1024 * 1024   # headroom under v7x's 64 MiB/TC; can be raised on v5e/v6e


def _tile(dim, preferred):
    """Pick (tile, padded_dim): full-dim block when the dim is small (satisfies (8,128) rule)."""
    if dim <= preferred:
        return dim, dim
    return preferred, pl.cdiv(dim, preferred) * preferred


def _pad_axis(x, axis, target):
    if x.shape[axis] == target:
        return x
    pad = [(0, 0)] * x.ndim
    pad[axis] = (0, target - x.shape[axis])
    return jnp.pad(x, pad)


# ----------------------------------------------------------------------------
# Pallas kernels
# ----------------------------------------------------------------------------

def _transformer_block_kernel(x_ref, g_ref, bn_ref, w1_ref, b1_ref, w2_ref, b2_ref,
                              o_ref, xn_ref, acc_ref):
    """One M-tile of  y = x + W2 @ gelu(W1 @ LayerNorm(x)), FF streamed in chunks.

    grid = (M tiles, FF chunks); FF is the reduction axis (last, "arbitrary"),
    the M axis is "parallel" (megacore sharding on v7x).
    """
    f = pl.program_id(1)
    nf = pl.num_programs(1)

    @pl.when(f == 0)
    def _():
        # LayerNorm once per M-tile; one-pass stats (var = E[x^2] - mu^2) to halve XLU reductions.
        x = x_ref[...].astype(jnp.float32)
        mu = jnp.mean(x, axis=-1, keepdims=True)
        var = jnp.mean(x * x, axis=-1, keepdims=True) - mu * mu
        xn = (x - mu) * jax.lax.rsqrt(var + 1e-5)
        xn = xn * g_ref[...] + bn_ref[...]
        xn_ref[...] = xn.astype(jnp.bfloat16)      # bf16 MXU operand, reused for every FF chunk
        acc_ref[...] = jnp.zeros_like(acc_ref)

    # bf16 x bf16 MXU matmuls, f32 accumulation; only a [tm, tf] intermediate is ever live.
    h = jnp.dot(xn_ref[...], w1_ref[...], preferred_element_type=jnp.float32) + b1_ref[...]
    h = jax.nn.gelu(h)
    acc_ref[...] += jnp.dot(h.astype(jnp.bfloat16), w2_ref[...],
                            preferred_element_type=jnp.float32)

    @pl.when(f == nf - 1)
    def _():
        x = x_ref[...].astype(jnp.float32)
        o_ref[...] = (x + acc_ref[...] + b2_ref[...]).astype(o_ref.dtype)


def _lm_head_kernel(x_ref, w_ref, b_ref, o_ref):
    """One (M tile, vocab tile) of logits = x @ W + b (bf16 operands, f32 out)."""
    o_ref[...] = (jnp.dot(x_ref[...], w_ref[...], preferred_element_type=jnp.float32)
                  + b_ref[...]).astype(o_ref.dtype)


# ----------------------------------------------------------------------------
# Kernel wrappers
# ----------------------------------------------------------------------------

@jax.jit
def transformer_block(x, params):
    """x: [B, S, H] -> [B, S, H] (same dtype).  y = x + W2 @ gelu(W1 @ LN(x))."""
    B, S, H = x.shape
    g, bn = params["ln_g"], params["ln_b"]
    w1, b1, w2, b2 = params["w1"], params["b1"], params["w2"], params["b2"]
    F = w1.shape[1]
    M = B * S

    tm, Mp = _tile(M, _TM)
    tf, Fp = _tile(F, _TF)

    xm = _pad_axis(x.reshape(M, H), 0, Mp)
    w1p = _pad_axis(w1, 1, Fp)     # gelu(0 + 0) @ 0-rows contributes nothing -> pad is exact
    b1p = _pad_axis(b1, 1, Fp)
    w2p = _pad_axis(w2, 0, Fp)

    cost = pl.CostEstimate(
        flops=4 * M * H * F,
        transcendentals=M * F,
        bytes_accessed=int(2 * M * H * xm.dtype.itemsize
                           + 2 * 2 * H * F          # bf16 w1 + w2
                           + 4 * (F + 3 * H)),      # biases + LN params
    )

    out = pl.pallas_call(
        _transformer_block_kernel,
        out_shape=jax.ShapeDtypeStruct((Mp, H), x.dtype),
        grid_spec=pltpu.PrefetchScalarGridSpec(
            num_scalar_prefetch=0,
            grid=(Mp // tm, Fp // tf),
            in_specs=[
                pl.BlockSpec((tm, H), lambda i, f: (i, 0)),   # x (resident across FF chunks)
                pl.BlockSpec((1, H), lambda i, f: (0, 0)),    # ln gamma
                pl.BlockSpec((1, H), lambda i, f: (0, 0)),    # ln beta
                pl.BlockSpec((H, tf), lambda i, f: (0, f)),   # w1 chunk (bf16, streamed)
                pl.BlockSpec((1, tf), lambda i, f: (0, f)),   # b1 chunk
                pl.BlockSpec((tf, H), lambda i, f: (f, 0)),   # w2 chunk (bf16, streamed)
                pl.BlockSpec((1, H), lambda i, f: (0, 0)),    # b2
            ],
            out_specs=pl.BlockSpec((tm, H), lambda i, f: (i, 0)),
            scratch_shapes=[
                pltpu.VMEM((tm, H), jnp.bfloat16),   # LN(x), cached across FF chunks
                pltpu.VMEM((tm, H), jnp.float32),    # f32 residual-branch accumulator
            ],
        ),
        compiler_params=pltpu.CompilerParams(
            dimension_semantics=("parallel", "arbitrary"),
            vmem_limit_bytes=_VMEM_LIMIT,
        ),
        cost_estimate=cost,
        input_output_aliases={0: 0},   # residual output overwrites the hidden-state buffer
    )(xm, g, bn, w1p, b1p, w2p, b2)

    return out[:M].reshape(B, S, H)


@jax.jit
def lm_head(x, params):
    """x: [B, S, H] -> logits [B, S, V] float32."""
    B, S, H = x.shape
    w, b = params["w"], params["b"]
    V = w.shape[1]
    M = B * S

    tm, Mp = _tile(M, _TM)
    tv, Vp = _tile(V, _TV)

    xm = _pad_axis(x.reshape(M, H).astype(jnp.bfloat16), 0, Mp)  # bf16 activations (halve x traffic)
    wp = _pad_axis(w, 1, Vp)
    bp = _pad_axis(b, 1, Vp)

    cost = pl.CostEstimate(
        flops=2 * M * H * V,
        transcendentals=0,
        bytes_accessed=int(2 * M * H + 2 * H * V + 4 * M * V + 4 * V),
    )

    out = pl.pallas_call(
        _lm_head_kernel,
        out_shape=jax.ShapeDtypeStruct((Mp, Vp), jnp.float32),
        grid_spec=pltpu.PrefetchScalarGridSpec(
            num_scalar_prefetch=0,
            grid=(Mp // tm, Vp // tv),
            in_specs=[
                pl.BlockSpec((tm, H), lambda i, j: (i, 0)),   # activations
                # TODO(synk): pipeline_mode=pl.Buffered(3) on this weight spec can further hide
                # the long weight DMA on the bandwidth-bound lm head.
                pl.BlockSpec((H, tv), lambda i, j: (0, j)),   # vocab-tile of W (bf16)
                pl.BlockSpec((1, tv), lambda i, j: (0, j)),   # vocab-tile of bias
            ],
            out_specs=pl.BlockSpec((tm, tv), lambda i, j: (i, j)),   # lane-dense output tiles
        ),
        compiler_params=pltpu.CompilerParams(
            dimension_semantics=("parallel", "parallel"),
            vmem_limit_bytes=_VMEM_LIMIT,
        ),
        cost_estimate=cost,
    )(xm, wp, bp)

    return out[:M, :V].reshape(B, S, V)


# ----------------------------------------------------------------------------
# ShardTransformer plumbing (mirrors the PyTorch module semantics)
# ----------------------------------------------------------------------------

def convert_args(args, kwargs, dtype):
    """JAX analogue of convert_args: cast floating tensors to the working `dtype`.

    Device placement (.to(device)) is a no-op on a single TPU; only dtype conversion is kept.
    bfloat16 is used as the low-precision working dtype (fp16 is not TPU-native).
    """
    float_dtypes = (jnp.float16, jnp.bfloat16, jnp.float32)

    def convert_tensor(t):
        if t.dtype in float_dtypes:
            t = t.astype(dtype)
        return t

    dev_args = [convert_tensor(a) if isinstance(a, jnp.ndarray) else a for a in args]
    new_kwargs = {k: (convert_tensor(v) if isinstance(v, jnp.ndarray) else v)
                  for k, v in kwargs.items()}
    return dev_args, new_kwargs


class Shard:
    """Runs its layers sequentially, threading outputs back through arg_fn."""

    def __init__(self, layers, arg_fn):
        self.layers = layers      # list of per-layer param dicts
        self.arg_fn = arg_fn

    def __call__(self, *args, **kwargs):
        # TODO(synk): layers cannot be fused into one pallas_call in general because arg_fn is
        # arbitrary Python run between layers (original module semantics).
        for layer_params in self.layers:
            output = transformer_block(args[0], layer_params)   # Pallas hot path
            args, kwargs = self.arg_fn(output, args, kwargs)
        return args, kwargs


class ShardTransformer:
    def __init__(self, shards, output_layer, grad_ckpt=False, train_mode=False, to_float=True):
        # grad_ckpt / train_mode only affect training-time behavior of quantized linears
        # in the original; forward semantics are unchanged.
        self.shards = [Shard(s["shard"], s["arg_fn"]) for s in shards]
        self.devices = [s["device"] for s in shards]
        # Working dtype between shards: f32 if to_float else bf16 (TPU-native low precision).
        self.dtype = jnp.float32 if to_float else jnp.bfloat16
        self.output_layer = output_layer["layer"]
        self.output_layer_fn = output_layer["fn"]
        self.grad_ckpt = grad_ckpt
        # TODO(synk): torch.utils.checkpoint (ckpt_shard) is a training-memory optimization
        # with identical forward semantics; not reproduced here.

    def __call__(self, *args, **kwargs):
        for i in range(len(self.shards)):
            args, kwargs = convert_args(args, kwargs, self.dtype)
            args, kwargs = self.shards[i](*args, **kwargs)
        hidden = self.output_layer_fn(args, kwargs)
        return lm_head(hidden, self.output_layer)               # Pallas hot path


# ----------------------------------------------------------------------------
# Deterministic parameter construction + demo
# ----------------------------------------------------------------------------

def make_block_params(key, hidden, ff):
    k1, k2 = jax.random.split(key)
    return {
        "ln_g": jnp.ones((1, hidden), jnp.float32),
        "ln_b": jnp.zeros((1, hidden), jnp.float32),
        # Matmul weights stored in bf16 (MXU-native, halves HBM weight traffic).
        "w1": (jax.random.normal(k1, (hidden, ff), jnp.float32) * 0.05).astype(jnp.bfloat16),
        "b1": jnp.zeros((1, ff), jnp.float32),
        "w2": (jax.random.normal(k2, (ff, hidden), jnp.float32) * 0.05).astype(jnp.bfloat16),
        "b2": jnp.zeros((1, hidden), jnp.float32),
    }


def reference_forward(x, model):
    """Pure-JAX reference with matching numerics (bf16 matmul operands, f32 accumulation)."""
    h = x.astype(jnp.float32)
    for shard in model.shards:
        for p in shard.layers:
            mu = jnp.mean(h, axis=-1, keepdims=True)
            var = jnp.mean(h * h, axis=-1, keepdims=True) - mu * mu
            xn = (h - mu) * jax.lax.rsqrt(var + 1e-5) * p["ln_g"] + p["ln_b"]
            xn = xn.astype(jnp.bfloat16)
            hm = jax.nn.gelu(jnp.dot(xn, p["w1"], preferred_element_type=jnp.float32) + p["b1"])
            y = jnp.dot(hm.astype(jnp.bfloat16), p["w2"],
                        preferred_element_type=jnp.float32) + p["b2"]
            h = h + y
    hb = h.astype(jnp.bfloat16)
    return (jnp.dot(hb, model.output_layer["w"], preferred_element_type=jnp.float32)
            + model.output_layer["b"])


if __name__ == "__main__":
    B, S, H, FF, V = 2, 8, 32, 64, 64
    n_shards, layers_per_shard = 2, 2

    key = jax.random.PRNGKey(0)
    key, xk = jax.random.split(key)
    # input hidden states, float16 on purpose: convert_args must upcast to float32
    x = jax.random.normal(xk, (B, S, H), jnp.float32).astype(jnp.float16)

    # build shards
    shard_cfgs = []
    arg_fn = lambda output, args, kwargs: ((output,), kwargs)   # thread hidden state
    for si in range(n_shards):
        layers = []
        for li in range(layers_per_shard):
            key, lk = jax.random.split(key)
            layers.append(make_block_params(lk, H, FF))
        shard_cfgs.append({"shard": layers, "arg_fn": arg_fn, "device": si})

    # output layer (lm head)
    key, ok = jax.random.split(key)
    output_layer = {
        "layer": {
            "w": (jax.random.normal(ok, (H, V), jnp.float32) * 0.05).astype(jnp.bfloat16),
            "b": jnp.zeros((1, V), jnp.float32),
        },
        "fn": lambda args, kwargs: args[0],
    }

    model = ShardTransformer(shard_cfgs, output_layer, grad_ckpt=False,
                             train_mode=False, to_float=True)

    logits = model(x)
    logits = jax.block_until_ready(logits)

    ref = reference_forward(x, model)
    assert logits.shape == (B, S, V) and logits.dtype == jnp.float32
    assert jnp.allclose(logits, ref, atol=5e-3, rtol=5e-3)

    print("KERNEL_OK")
</pallas_src>

<mosaic_0001>
module attributes {stable_mosaic.version = 11 : i64} {
  func.func @_transformer_block_kernel(%arg0: i32, %arg1: i32, %arg2: memref<16x32xf32, #tpu.memory_space<vmem>>, %arg3: memref<1x32xf32, #tpu.memory_space<vmem>>, %arg4: memref<1x32xf32, #tpu.memory_space<vmem>>, %arg5: memref<32x64xbf16, #tpu.memory_space<vmem>>, %arg6: memref<1x64xf32, #tpu.memory_space<vmem>>, %arg7: memref<64x32xbf16, #tpu.memory_space<vmem>>, %arg8: memref<1x32xf32, #tpu.memory_space<vmem>>, %arg9: memref<16x32xf32, #tpu.memory_space<vmem>>, %arg10: memref<16x32xbf16, #tpu.memory_space<vmem>>, %arg11: memref<16x32xf32, #tpu.memory_space<vmem>>) attributes {dimension_semantics = [#tpu.dimension_semantics<parallel>, #tpu.dimension_semantics<arbitrary>], iteration_bounds = array<i64: 1, 1>, scalar_prefetch = 0 : i64, scratch_operands = 2 : i64, tpu.core_type = #tpu.core_type<tc>, window_params = [{transform_indices = @transform_0, window_bounds = array<i64: 16, 32>}, {pipeline_mode = #tpu.pipeline_mode<synchronous>, transform_indices = @transform_1, window_bounds = array<i64: 1, 32>}, {pipeline_mode = #tpu.pipeline_mode<synchronous>, transform_indices = @transform_2, window_bounds = array<i64: 1, 32>}, {transform_indices = @transform_3, window_bounds = array<i64: 32, 64>}, {transform_indices = @transform_4, window_bounds = array<i64: 1, 64>}, {transform_indices = @transform_5, window_bounds = array<i64: 64, 32>}, {pipeline_mode = #tpu.pipeline_mode<synchronous>, transform_indices = @transform_6, window_bounds = array<i64: 1, 32>}, {transform_indices = @transform_7, window_bounds = array<i64: 16, 32>}]} {
    %c0_i32 = arith.constant 0 : i32
    %0 = arith.cmpi eq, %arg1, %c0_i32 : i32
    %1 = arith.extui %0 : i1 to i32
    %c0_i32_0 = arith.constant 0 : i32
    %2 = arith.cmpi ne, %1, %c0_i32_0 : i32
    scf.if %2 {
      %c0_19 = arith.constant 0 : index
      %c0_20 = arith.constant 0 : index
      %31 = vector.load %arg2[%c0_19, %c0_20] : memref<16x32xf32, #tpu.memory_space<vmem>>, vector<16x32xf32>
      %cst_21 = arith.constant dense<0.000000e+00> : vector<16xf32>
      %32 = vector.multi_reduction <add>, %31, %cst_21 [1] : vector<16x32xf32> to vector<16xf32>
      %33 = vector.shape_cast %32 : vector<16xf32> to vector<16x1xf32>
      %cst_22 = arith.constant 3.200000e+01 : f32
      %34 = vector.broadcast %cst_22 : f32 to vector<16x1xf32>
      %35 = arith.divf %33, %34 : vector<16x1xf32>
      %36 = arith.mulf %31, %31 : vector<16x32xf32>
      %cst_23 = arith.constant dense<0.000000e+00> : vector<16xf32>
      %37 = vector.multi_reduction <add>, %36, %cst_23 [1] : vector<16x32xf32> to vector<16xf32>
      %38 = vector.shape_cast %37 : vector<16xf32> to vector<16x1xf32>
      %cst_24 = arith.constant 3.200000e+01 : f32
      %39 = vector.broadcast %cst_24 : f32 to vector<16x1xf32>
      %40 = arith.divf %38, %39 : vector<16x1xf32>
      %41 = arith.mulf %35, %35 : vector<16x1xf32>
      %42 = arith.subf %40, %41 : vector<16x1xf32>
      %43 = vector.broadcast %35 : vector<16x1xf32> to vector<16x32xf32>
      %44 = arith.subf %31, %43 : vector<16x32xf32>
      %cst_25 = arith.constant 9.99999974E-6 : f32
      %45 = vector.broadcast %cst_25 : f32 to vector<16x1xf32>
      %46 = arith.addf %42, %45 : vector<16x1xf32>
      %47 = math.rsqrt %46 : vector<16x1xf32>
      %48 = vector.broadcast %47 : vector<16x1xf32> to vector<16x32xf32>
      %49 = arith.mulf %44, %48 : vector<16x32xf32>
      %c0_26 = arith.constant 0 : index
      %c0_27 = arith.constant 0 : index
      %50 = vector.load %arg3[%c0_26, %c0_27] : memref<1x32xf32, #tpu.memory_space<vmem>>, vector<1x32xf32>
      %51 = vector.broadcast %50 : vector<1x32xf32> to vector<16x32xf32>
      %52 = arith.mulf %49, %51 : vector<16x32xf32>
      %c0_28 = arith.constant 0 : index
      %c0_29 = arith.constant 0 : index
      %53 = vector.load %arg4[%c0_28, %c0_29] : memref<1x32xf32, #tpu.memory_space<vmem>>, vector<1x32xf32>
      %54 = vector.broadcast %53 : vector<1x32xf32> to vector<16x32xf32>
      %55 = arith.addf %52, %54 : vector<16x32xf32>
      %56 = arith.truncf %55 : vector<16x32xf32> to vector<16x32xbf16>
      %c0_30 = arith.constant 0 : index
      %c0_31 = arith.constant 0 : index
      %57 = vector.load %arg10[%c0_30, %c0_31] : memref<16x32xbf16, #tpu.memory_space<vmem>>, vector<16x32xbf16>
      tpu.vector_store %arg10[%c0_30, %c0_31], %56 {strides = array<i32>} : memref<16x32xbf16, #tpu.memory_space<vmem>>, vector<16x32xbf16>,
      %cst_32 = arith.constant 0.000000e+00 : f32
      %58 = vector.broadcast %cst_32 : f32 to vector<16x32xf32>
      %c0_33 = arith.constant 0 : index
      %c0_34 = arith.constant 0 : index
      %59 = vector.load %arg11[%c0_33, %c0_34] : memref<16x32xf32, #tpu.memory_space<vmem>>, vector<16x32xf32>
      tpu.vector_store %arg11[%c0_33, %c0_34], %58 {strides = array<i32>} : memref<16x32xf32, #tpu.memory_space<vmem>>, vector<16x32xf32>,
    } else {
    }
    %c0 = arith.constant 0 : index
    %c0_1 = arith.constant 0 : index
    %3 = vector.load %arg10[%c0, %c0_1] : memref<16x32xbf16, #tpu.memory_space<vmem>>, vector<16x32xbf16>
    %c0_2 = arith.constant 0 : index
    %c0_3 = arith.constant 0 : index
    %4 = vector.load %arg5[%c0_2, %c0_3] : memref<32x64xbf16, #tpu.memory_space<vmem>>, vector<32x64xbf16>
    %cst = arith.constant dense<0.000000e+00> : vector<16x64xf32>
    %5 = tpu.matmul %3, %4, %cst {dimension_numbers = #tpu.dot_dimension_numbers<[1], [0], [0], [1], [0, 0, 1, 1], [], []>} : vector<16x32xbf16>, vector<32x64xbf16>, vector<16x64xf32> -> vector<16x64xf32>
    %c0_4 = arith.constant 0 : index
    %c0_5 = arith.constant 0 : index
    %6 = vector.load %arg6[%c0_4, %c0_5] : memref<1x64xf32, #tpu.memory_space<vmem>>, vector<1x64xf32>
    %7 = vector.broadcast %6 : vector<1x64xf32> to vector<16x64xf32>
    %8 = arith.addf %5, %7 : vector<16x64xf32>
    %9 = arith.mulf %8, %8 : vector<16x64xf32>
    %10 = arith.mulf %8, %9 : vector<16x64xf32>
    %cst_6 = arith.constant 4.471500e-02 : f32
    %11 = vector.broadcast %cst_6 : f32 to vector<16x64xf32>
    %12 = arith.mulf %11, %10 : vector<16x64xf32>
    %13 = arith.addf %8, %12 : vector<16x64xf32>
    %cst_7 = arith.constant 0.797884583 : f32
    %14 = vector.broadcast %cst_7 : f32 to vector<16x64xf32>
    %15 = arith.mulf %14, %13 : vector<16x64xf32>
    %16 = math.tanh %15 : vector<16x64xf32>
    %cst_8 = arith.constant 1.000000e+00 : f32
    %17 = vector.broadcast %cst_8 : f32 to vector<16x64xf32>
    %18 = arith.addf %17, %16 : vector<16x64xf32>
    %cst_9 = arith.constant 5.000000e-01 : f32
    %19 = vector.broadcast %cst_9 : f32 to vector<16x64xf32>
    %20 = arith.mulf %19, %18 : vector<16x64xf32>
    %21 = arith.mulf %8, %20 : vector<16x64xf32>
    %c0_10 = arith.constant 0 : index
    %c0_11 = arith.constant 0 : index
    %22 = vector.load %arg11[%c0_10, %c0_11] : memref<16x32xf32, #tpu.memory_space<vmem>>, vector<16x32xf32>
    %23 = arith.truncf %21 : vector<16x64xf32> to vector<16x64xbf16>
    %c0_12 = arith.constant 0 : index
    %c0_13 = arith.constant 0 : index
    %24 = vector.load %arg7[%c0_12, %c0_13] : memref<64x32xbf16, #tpu.memory_space<vmem>>, vector<64x32xbf16>
    %cst_14 = arith.constant dense<0.000000e+00> : vector<16x32xf32>
    %25 = tpu.matmul %23, %24, %cst_14 {dimension_numbers = #tpu.dot_dimension_numbers<[1], [0], [0], [1], [0, 0, 1, 1], [], []>} : vector<16x64xbf16>, vector<64x32xbf16>, vector<16x32xf32> -> vector<16x32xf32>
    %26 = arith.addf %22, %25 : vector<16x32xf32>
    %c0_15 = arith.constant 0 : index
    %c0_16 = arith.constant 0 : index
    %27 = vector.load %arg11[%c0_15, %c0_16] : memref<16x32xf32, #tpu.memory_space<vmem>>, vector<16x32xf32>
    tpu.vector_store %arg11[%c0_15, %c0_16], %26 {strides = array<i32>} : memref<16x32xf32, #tpu.memory_space<vmem>>, vector<16x32xf32>,
    %c0_i32_17 = arith.constant 0 : i32
    %28 = arith.cmpi eq, %arg1, %c0_i32_17 : i32
    %29 = arith.extui %28 : i1 to i32
    %c0_i32_18 = arith.constant 0 : i32
    %30 = arith.cmpi ne, %29, %c0_i32_18 : i32
    scf.if %30 {
      %c0_19 = arith.constant 0 : index
      %c0_20 = arith.constant 0 : index
      %31 = vector.load %arg2[%c0_19, %c0_20] : memref<16x32xf32, #tpu.memory_space<vmem>>, vector<16x32xf32>
      %c0_21 = arith.constant 0 : index
      %c0_22 = arith.constant 0 : index
      %32 = vector.load %arg11[%c0_21, %c0_22] : memref<16x32xf32, #tpu.memory_space<vmem>>, vector<16x32xf32>
      %33 = arith.addf %31, %32 : vector<16x32xf32>
      %c0_23 = arith.constant 0 : index
      %c0_24 = arith.constant 0 : index
      %34 = vector.load %arg8[%c0_23, %c0_24] : memref<1x32xf32, #tpu.memory_space<vmem>>, vector<1x32xf32>
      %35 = vector.broadcast %34 : vector<1x32xf32> to vector<16x32xf32>
      %36 = arith.addf %33, %35 : vector<16x32xf32>
      %c0_25 = arith.constant 0 : index
      %c0_26 = arith.constant 0 : index
      %37 = vector.load %arg9[%c0_25, %c0_26] : memref<16x32xf32, #tpu.memory_space<vmem>>, vector<16x32xf32>
      tpu.vector_store %arg9[%c0_25, %c0_26], %36 {strides = array<i32>} : memref<16x32xf32, #tpu.memory_space<vmem>>, vector<16x32xf32>,
    } else {
    }
    return
  }
  func.func @transform_0(%arg0: i32, %arg1: i32) -> (i32, i32) {
    %c0_i32 = arith.constant 0 : i32
    %c0_i32_0 = arith.constant 0 : i32
    return %arg0, %c0_i32 : i32, i32
  }
  func.func @transform_1(%arg0: i32, %arg1: i32) -> (i32, i32) {
    %c0_i32 = arith.constant 0 : i32
    %c0_i32_0 = arith.constant 0 : i32
    %c0_i32_1 = arith.constant 0 : i32
    return %c0_i32, %c0_i32_0 : i32, i32
  }
  func.func @transform_2(%arg0: i32, %arg1: i32) -> (i32, i32) {
    %c0_i32 = arith.constant 0 : i32
    %c0_i32_0 = arith.constant 0 : i32
    %c0_i32_1 = arith.constant 0 : i32
    return %c0_i32, %c0_i32_0 : i32, i32
  }
  func.func @transform_3(%arg0: i32, %arg1: i32) -> (i32, i32) {
    %c0_i32 = arith.constant 0 : i32
    %c0_i32_0 = arith.constant 0 : i32
    return %c0_i32, %arg1 : i32, i32
  }
  func.func @transform_4(%arg0: i32, %arg1: i32) -> (i32, i32) {
    %c0_i32 = arith.constant 0 : i32
    %c0_i32_0 = arith.constant 0 : i32
    return %c0_i32, %arg1 : i32, i32
  }
  func.func @transform_5(%arg0: i32, %arg1: i32) -> (i32, i32) {
    %c0_i32 = arith.constant 0 : i32
    %c0_i32_0 = arith.constant 0 : i32
    return %arg1, %c0_i32 : i32, i32
  }
  func.func @transform_6(%arg0: i32, %arg1: i32) -> (i32, i32) {
    %c0_i32 = arith.constant 0 : i32
    %c0_i32_0 = arith.constant 0 : i32
    %c0_i32_1 = arith.constant 0 : i32
    return %c0_i32, %c0_i32_0 : i32, i32
  }
  func.func @transform_7(%arg0: i32, %arg1: i32) -> (i32, i32) {
    %c0_i32 = arith.constant 0 : i32
    %c0_i32_0 = arith.constant 0 : i32
    return %arg0, %c0_i32 : i32, i32
  }
}

</mosaic_0001>

<llo_original>
// kernel: transformer_block.1
$region0: #{transformer_block.1}
  #allocation0 [shape = 'u32[]', space=smem, size = 0x4, offset = 0x4, fixed_abs, tag = 'smem constant byte address 0x4 - core index']
  #allocation1 [shape = 'u32[144,128]{1,0:T(1,128)}', space=vmem, size = 0x12000, scoped, tag = 'internal scratch']
  #allocation2 [shape = 'bf16[16,32]{1,0:T(16,128)(2,1)}', space=vmem, size = 0x1000, scoped, tag = 'scratch operand']
  #allocation3 [shape = 'f32[16,32]{1,0:T(8,128)}', space=vmem, size = 0x2000, scoped, tag = 'scratch operand']
  %s0 = inlined_call_operand.vmem [shape: f32[16,32], index: 0, kind: input, shape index: {}, may-alias: {0,7}]
  %s1 = inlined_call_operand.vmem [shape: f32[1,32], index: 1, kind: input, shape index: {}]
  %s2 = inlined_call_operand.vmem [shape: f32[1,32], index: 2, kind: input, shape index: {}]
  %s3 = inlined_call_operand.vmem [shape: bf16[32,64], index: 3, kind: input, shape index: {}]
  %s4 = inlined_call_operand.vmem [shape: f32[1,64], index: 4, kind: input, shape index: {}]
  %s5 = inlined_call_operand.vmem [shape: bf16[64,32], index: 5, kind: input, shape index: {}]
  %s6 = inlined_call_operand.vmem [shape: f32[1,32], index: 6, kind: input, shape index: {}]
  %s7 = inlined_call_operand.vmem [shape: f32[16,32], index: 7, kind: output, shape index: {}, may-alias: {0,7}]
  %s8 = sld [smem:[#allocation0]]
  $region46: #{transformer_block.1} parent=0
    _
  %s10 = ssub.s32 1, %s8
  %s11 = scalar_select 0, %s10, %s8
  // Predicated region
  $region2: #{transformer_block.1} parent=0 // pred_check
    _
  $region3: #{transformer_block.1} parent=0 // pred_check_branch
    %13 = sbr.rel (0) target = $region5
  $region4: #{transformer_block.1} parent=0 // pred_region
    _
  $region5: #{transformer_block.1} parent=0 // pred_fallthru
    _
  // Predicated region
  $region6: #{transformer_block.1} parent=0 // pred_check
    _
  $region7: #{transformer_block.1} parent=0 // pred_check_branch
    %15 = sbr.rel (0) target = $region9
  $region8: #{transformer_block.1} parent=0 // pred_region
    _
  $region9: #{transformer_block.1} parent=0 // pred_fallthru
    _
  // Predicated region
  $region10: #{transformer_block.1} parent=0 // pred_check
    _
  $region11: #{transformer_block.1} parent=0 // pred_check_branch
    %17 = sbr.rel (0) target = $region13
  $region12: #{transformer_block.1} parent=0 // pred_region
    _
  $region13: #{transformer_block.1} parent=0 // pred_fallthru
    _
  // Predicated region
  $region14: #{transformer_block.1} parent=0 // pred_check
    _
  $region15: #{transformer_block.1} parent=0 // pred_check_branch
    %19 = sbr.rel (0) target = $region17
  $region16: #{transformer_block.1} parent=0 // pred_region
    _
  $region17: #{transformer_block.1} parent=0 // pred_fallthru
    _
  // Predicated region
  $region18: #{transformer_block.1} parent=0 // pred_check
    _
  $region19: #{transformer_block.1} parent=0 // pred_check_branch
    %21 = sbr.rel (0) target = $region21
  $region20: #{transformer_block.1} parent=0 // pred_region
    _
  $region21: #{transformer_block.1} parent=0 // pred_fallthru
    _
  // Predicated region
  $region22: #{transformer_block.1} parent=0 // pred_check
    _
  $region23: #{transformer_block.1} parent=0 // pred_check_branch
    %23 = sbr.rel (0) target = $region25
  $region24: #{transformer_block.1} parent=0 // pred_region
    _
  $region25: #{transformer_block.1} parent=0 // pred_fallthru
    _
  // Predicated region
  $region26: #{transformer_block.1} parent=0 // pred_check
    _
  $region27: #{transformer_block.1} parent=0 // pred_check_branch
    %25 = sbr.rel (0) target = $region29
  $region28: #{transformer_block.1} parent=0 // pred_region
    _
  $region29: #{transformer_block.1} parent=0 // pred_fallthru
    _
  %p27 = scmp.eq.s32.totalorder 0, 0
  // Predicated region
  $region30: #{transformer_block.1} parent=0 // pred_check
    %p28 = pneg %p27
  $region31: #{transformer_block.1} parent=0 // pred_check_branch
    %30 = sbr.rel (%p28) target = $region33
  $region32: #{transformer_block.1} parent=0 // pred_region
    %v31 = vld [vmem:[%s0] sm:$0xff]
    %v32 = vld [vmem:[%s0 + $0x8] sm:$0xff]
    %vm33 = vcmask 261120
    %v34 = vsel %vm33, %v31, 0.0
    %35 = vadd.xlane.f32.xlu0 %v34
    %v36 = vpop.xlane.xlu0 %35
    %v37 = vsel %vm33, %v32, 0.0
    %38 = vadd.xlane.f32.xlu0 %v37
    %v39 = vpop.xlane.xlu0 %38
    %v40 = vrcp.pop 32.0
    %v41 = vmul.f32 %v36, %v40
    %v42 = vmul.f32 %v39, %v40
    %v43 = vmul.f32 %v31, %v31
    %v44 = vmul.f32 %v32, %v32
    %v45 = vsel %vm33, %v43, 0.0
    %46 = vadd.xlane.f32.xlu0 %v45
    %v47 = vpop.xlane.xlu0 %46
    %v48 = vsel %vm33, %v44, 0.0
    %49 = vadd.xlane.f32.xlu0 %v48
    %v50 = vpop.xlane.xlu0 %49
    %v51 = vmul.f32 %v47, %v40
    %v52 = vmul.f32 %v50, %v40
    %v53 = vmul.f32 %v41, %v41
    %v54 = vmul.f32 %v42, %v42
    %v55 = vsub.f32 %v51, %v53
    %v56 = vsub.f32 %v52, %v54
    %v57 = vsub.f32 %v31, %v41
    %v58 = vsub.f32 %v32, %v42
    %v59 = vadd.f32 %v55, 1e-05
    %v60 = vadd.f32 %v56, 1e-05
    %v61 = vrsqrt.pop %v59
    %v62 = vrsqrt.pop %v60
    %v63 = vmul.f32 %v57, %v61
    %v64 = vmul.f32 %v58, %v62
    %v65 = vld [vmem:[%s1] sm:$0x1]
    %v67 = vlaneseq
    %v68 = vshrl.u32 %v67, 7
    %v69 = vsub.s32 0, %v68
    %v70 = vrot.slane %v65, %v69
    %v72 = vmul.f32 %v63, %v70
    %v73 = vmul.f32 %v64, %v70
    %v74 = vld [vmem:[%s2] sm:$0x1]
    %v76 = vlaneseq
    %v77 = vshrl.u32 %v76, 7
    %v78 = vsub.s32 0, %v77
    %v79 = vrot.slane %v74, %v78
    %v81 = vadd.f32 %v72, %v79
    %v82 = vadd.f32 %v73, %v79
    %v83 = vpack.c.bf16 %v82, %v81
    %84 = vst.msk [vmem:[#allocation2] sm:$0xff] %vm33, %v83
    %85 = vst.msk [vmem:[#allocation3] sm:$0xff] %vm33, 0.0
    %86 = vst.msk [vmem:[#allocation3 + $0x8] sm:$0xff] %vm33, 0.0
  $region33: #{transformer_block.1} parent=0 // pred_fallthru
    _
  %v87 = vld [vmem:[#allocation2] sm:$0xff]
  %v88 = vld [vmem:[%s3] sm:$0xf]
  %v89 = vld [vmem:[%s3 + $0x4] sm:$0xf]
  %v90 = vld [vmem:[%s3 + $0x8] sm:$0xf]
  %v91 = vld [vmem:[%s3 + $0xc] sm:$0xf]
  %v92 = vld [vmem:[%s4] sm:$0x1]
  %v94 = vlaneseq
  %v95 = vshrl.u32 %v94, 7
  %v96 = vsub.s32 0, %v95
  %v97 = vrot.slane %v92, %v96
  %v103 = vunpack.c.l.b16 %v88
  %v104 = vunpack.c.l.b16 %v89
  %v105 = vunpack.c.l.b16 %v90
  %v106 = vunpack.c.l.b16 %v91
  %v107 = vpack.c.b16 %v104, %v103
  %v108 = vpack.c.b16 %v106, %v105
  %vm111 = vcmask 261120
  %v113 = vsel %vm111, %v87, 0
  %115 = vmatprep.subr.bf16.mxu0 0
  %116 = vmatpush1.bf16.msra.mxu0 %v107
  %117 = vmatprep.subr.bf16.mxu0 0
  %118 = vmatpush1.bf16.msra.mxu0 %v108
  %119 = vmatprep.subr.bf16.mxu0 0
  %120 = vmatpush1.bf16.msra.mxu0 0
  %121 = vmatprep.subr.bf16.mxu0 0
  %122 = vmatpush1.bf16.msra.mxu0 0
  %123 = vmatprep.subr.bf16.mxu0 0
  %124 = vmatpush1.bf16.msra.mxu0 0
  %125 = vmatprep.subr.bf16.mxu0 0
  %126 = vmatpush1.bf16.msra.mxu0 0
  %127 = vmatprep.subr.bf16.mxu0 0
  %128 = vmatpush1.bf16.msra.mxu0 0
  %129 = vmatprep.subr.bf16.mxu0 0
  %130 = vmatpush1.bf16.msra.mxu0 0
  %131 = vmatprep.subr.bf16.mxu0 0
  %132 = vmatpush1.bf16.msra.mxu0 0
  %133 = vmatprep.subr.bf16.mxu0 0
  %134 = vmatpush1.bf16.msra.mxu0 0
  %135 = vmatprep.subr.bf16.mxu0 0
  %136 = vmatpush1.bf16.msra.mxu0 0
  %137 = vmatprep.subr.bf16.mxu0 0
  %138 = vmatpush1.bf16.msra.mxu0 0
  %139 = vmatprep.subr.bf16.mxu0 0
  %140 = vmatpush1.bf16.msra.mxu0 0
  %141 = vmatprep.subr.bf16.mxu0 0
  %142 = vmatpush1.bf16.msra.mxu0 0
  %143 = vmatprep.subr.bf16.mxu0 0
  %144 = vmatpush1.bf16.msra.mxu0 0
  %145 = vmatprep.subr.bf16.mxu0 0
  %146 = vmatpush1.bf16.msra.mxu0 0
  %147 = vmatprep.mubr.bf16.mxu0 0
  %148 = vmatmul.mubr.bf16.gmra.mrb[0].mxu0 %v113
  %v149 = vpop.f32.mrb[0].mxu0
  %v150 = vadd.f32 %v97, %v149
  %v151 = vpop.f32.mrb[0].mxu0
  %v152 = vpop.f32.mrb[0].mxu0
  %v153 = vadd.f32 %v97, %v152
  %v154 = vpop.f32.mrb[0].mxu0
  %155 = vdwg.mxu0
  %v156 = vmul.f32 %v150, %v150
  %v157 = vmul.f32 %v153, %v153
  %v158 = vmul.f32 %v150, %v156
  %v159 = vmul.f32 %v153, %v157
  %v160 = vmul.f32 %v158, 0.044715
  %v161 = vmul.f32 %v159, 0.044715
  %v162 = vadd.f32 %v150, %v160
  %v163 = vadd.f32 %v153, %v161
  %v164 = vmul.f32 %v162, 0.7978846
  %v165 = vmul.f32 %v163, 0.7978846
  %v166 = vtanh.pop %v164
  %v167 = vtanh.pop %v165
  %v168 = vadd.f32 %v166, 1.0
  %v169 = vadd.f32 %v167, 1.0
  %v170 = vmul.f32 %v168, 0.5
  %v171 = vmul.f32 %v169, 0.5
  %v172 = vmul.f32 %v150, %v170
  %v173 = vmul.f32 %v153, %v171
  %v174 = vld [vmem:[#allocation3] sm:$0xff]
  %v175 = vld [vmem:[#allocation3 + $0x8] sm:$0xff]
  %v176 = vpack.c.bf16 %v173, %v172
  %v177 = vld [vmem:[%s5] sm:$0xf]
  %v178 = vld [vmem:[%s5 + $0x4] sm:$0xf]
  %v179 = vld [vmem:[%s5 + $0x8] sm:$0xf]
  %v180 = vld [vmem:[%s5 + $0xc] sm:$0xf]
  %v181 = vld [vmem:[%s5 + $0x10] sm:$0xf]
  %v182 = vld [vmem:[%s5 + $0x14] sm:$0xf]
  %v183 = vld [vmem:[%s5 + $0x18] sm:$0xf]
  %v184 = vld [vmem:[%s5 + $0x1c] sm:$0xf]
  %v193 = vunpack.c.l.b16 %v177
  %v194 = vunpack.c.l.b16 %v178
  %v195 = vunpack.c.l.b16 %v179
  %v196 = vunpack.c.l.b16 %v180
  %v197 = vunpack.c.l.b16 %v181
  %v198 = vunpack.c.l.b16 %v182
  %v199 = vunpack.c.l.b16 %v183
  %v200 = vunpack.c.l.b16 %v184
  %v201 = vpack.c.b16 %v194, %v193
  %v202 = vpack.c.b16 %v196, %v195
  %v203 = vpack.c.b16 %v198, %v197
  %v204 = vpack.c.b16 %v200, %v199
  %vm209 = vcmask 523264
  %v211 = vsel %vm209, %v176, 0
  %213 = vmatprep.subr.bf16.mxu0 0
  %214 = vmatpush1.bf16.msra.mxu0 %v201
  %215 = vmatprep.subr.bf16.mxu0 0
  %216 = vmatpush1.bf16.msra.mxu0 %v202
  %217 = vmatprep.subr.bf16.mxu0 0
  %218 = vmatpush1.bf16.msra.mxu0 %v203
  %219 = vmatprep.subr.bf16.mxu0 0
  %220 = vmatpush1.bf16.msra.mxu0 %v204
  %221 = vmatprep.subr.bf16.mxu0 0
  %222 = vmatpush1.bf16.msra.mxu0 0
  %223 = vmatprep.subr.bf16.mxu0 0
  %224 = vmatpush1.bf16.msra.mxu0 0
  %225 = vmatprep.subr.bf16.mxu0 0
  %226 = vmatpush1.bf16.msra.mxu0 0
  %227 = vmatprep.subr.bf16.mxu0 0
  %228 = vmatpush1.bf16.msra.mxu0 0
  %229 = vmatprep.subr.bf16.mxu0 0
  %230 = vmatpush1.bf16.msra.mxu0 0
  %231 = vmatprep.subr.bf16.mxu0 0
  %232 = vmatpush1.bf16.msra.mxu0 0
  %233 = vmatprep.subr.bf16.mxu0 0
  %234 = vmatpush1.bf16.msra.mxu0 0
  %235 = vmatprep.subr.bf16.mxu0 0
  %236 = vmatpush1.bf16.msra.mxu0 0
  %237 = vmatprep.subr.bf16.mxu0 0
  %238 = vmatpush1.bf16.msra.mxu0 0
  %239 = vmatprep.subr.bf16.mxu0 0
  %240 = vmatpush1.bf16.msra.mxu0 0
  %241 = vmatprep.subr.bf16.mxu0 0
  %242 = vmatpush1.bf16.msra.mxu0 0
  %243 = vmatprep.subr.bf16.mxu0 0
  %244 = vmatpush1.bf16.msra.mxu0 0
  %245 = vmatprep.mubr.bf16.mxu0 0
  %246 = vmatmul.mubr.bf16.gmra.mrb[0].mxu0 %v211
  %v247 = vpop.f32.mrb[0].mxu0
  %v248 = vadd.f32 0.0, %v247
  %v249 = vpop.f32.mrb[0].mxu0
  %v250 = vpop.f32.mrb[0].mxu0
  %v251 = vadd.f32 0.0, %v250
  %v252 = vpop.f32.mrb[0].mxu0
  %253 = vdwg.mxu0
  %v254 = vadd.f32 %v174, %v248
  %v255 = vadd.f32 %v175, %v251
  %256 = vst.msk [vmem:[#allocation3] sm:$0xff] %vm111, %v254
  %257 = vst.msk [vmem:[#allocation3 + $0x8] sm:$0xff] %vm111, %v255
  // Predicated region
  $region34: #{transformer_block.1} parent=0 // pred_check
    %p258 = pneg %p27
  $region35: #{transformer_block.1} parent=0 // pred_check_branch
    %260 = sbr.rel (%p258) target = $region37
  $region36: #{transformer_block.1} parent=0 // pred_region
    %v261 = vld [vmem:[%s0] sm:$0xff]
    %v262 = vld [vmem:[%s0 + $0x8] sm:$0xff]
    %v263 = vld [vmem:[#allocation3] sm:$0xff]
    %v264 = vld [vmem:[#allocation3 + $0x8] sm:$0xff]
    %v265 = vadd.f32 %v261, %v263
    %v266 = vadd.f32 %v262, %v264
    %v267 = vld [vmem:[%s6] sm:$0x1]
    %v269 = vlaneseq
    %v270 = vshrl.u32 %v269, 7
    %v271 = vsub.s32 0, %v270
    %v272 = vrot.slane %v267, %v271
    %v274 = vadd.f32 %v265, %v272
    %v275 = vadd.f32 %v266, %v272
    %276 = vst.msk [vmem:[%s7] sm:$0xff] %vm111, %v274
    %277 = vst.msk [vmem:[%s7 + $0x8] sm:$0xff] %vm111, %v275
  $region37: #{transformer_block.1} parent=0 // pred_fallthru
    _
  // Predicated region
  $region38: #{transformer_block.1} parent=0 // pred_check
    _
  $region39: #{transformer_block.1} parent=0 // pred_check_branch
    %279 = sbr.rel (0) target = $region41
  $region40: #{transformer_block.1} parent=0 // pred_region
    _
  $region41: #{transformer_block.1} parent=0 // pred_fallthru
    _
  // Predicated region
  $region42: #{transformer_block.1} parent=0 // pred_check
    _
  $region43: #{transformer_block.1} parent=0 // pred_check_branch
    %281 = sbr.rel (0) target = $region45
  $region44: #{transformer_block.1} parent=0 // pred_region
    _
  $region45: #{transformer_block.1} parent=0 // pred_fallthru
    _

</llo_original>
